<compile_context>
chip_gen: v7x
topology: tpu7x:2x2x1
jax: 0.10.0
libtpu: 0.0.40
codegen_flags: <defaults>
</compile_context>

<pallas_src>
import functools
import math

import jax
import jax.numpy as jnp
from jax import lax
from jax.experimental import pallas as pl
from jax.experimental.pallas import tpu as pltpu


def _round_up(x: int, m: int) -> int:
    return ((x + m - 1) // m) * m


def _round_down(x: int, m: int) -> int:
    return (x // m) * m


@functools.lru_cache(maxsize=1)
def _vmem_capacity_bytes() -> int:
    """Per-TensorCore VMEM capacity; conservative (v7x-like) fallback."""
    try:
        return int(pltpu.get_tpu_info().vmem_capacity_bytes)
    except Exception:
        return 64 * 1024 * 1024


# --------------------------------------------------------------------------
# Kernels
# --------------------------------------------------------------------------
def _linear_kernel_single(x_ref, w_ref, b_ref, o_ref):
    """Full-K contraction in one grid step: o = x @ w + b (bias add in f32)."""
    x = x_ref[...].astype(w_ref.dtype)                 # cast for the MXU (bf16)
    acc = jnp.dot(x, w_ref[...], preferred_element_type=jnp.float32)
    o_ref[...] = (acc + b_ref[...].astype(jnp.float32)).astype(o_ref.dtype)


def _linear_kernel_ksplit(x_ref, w_ref, b_ref, o_ref, acc_ref, *,
                          k_valid, tk, n_k):
    """K split across grid axis 2: f32 VMEM accumulator, write on last chunk."""
    kk = pl.program_id(2)

    @pl.when(kk == 0)
    def _init():
        acc_ref[...] = jnp.zeros_like(acc_ref)

    x = x_ref[...]
    w = w_ref[...]
    if k_valid % tk != 0:
        # Static gate: only emitted when the last K chunk is partial.  Zero the
        # out-of-range tail of both operands (edge blocks contain garbage).
        koff = kk * tk
        xcol = lax.broadcasted_iota(jnp.int32, x.shape, 1) + koff
        x = jnp.where(xcol < k_valid, x, jnp.zeros_like(x))
        wrow = lax.broadcasted_iota(jnp.int32, w.shape, 0) + koff
        w = jnp.where(wrow < k_valid, w, jnp.zeros_like(w))

    acc_ref[...] += jnp.dot(x.astype(w_ref.dtype), w,
                            preferred_element_type=jnp.float32)

    @pl.when(kk == n_k - 1)
    def _finalize():
        o_ref[...] = (acc_ref[...] + b_ref[...].astype(jnp.float32)
                      ).astype(o_ref.dtype)


# --------------------------------------------------------------------------
# Parameter preparation (one-time, outside the jitted forward)
# --------------------------------------------------------------------------
def prepare_linear_params(weight, bias, compute_dtype=jnp.bfloat16):
    """Convert PyTorch nn.Linear params to the kernel layout (done once).

    weight: [N, K] (PyTorch layout) -> w_t: [K, Np] in `compute_dtype`,
            Np = round_up(N, 128) (lane-dense RHS, zero-padded columns).
    bias:   [N] -> b2d: [1, Np] float32 (bias add stays in f32).
    """
    N, K = weight.shape
    n_pad = _round_up(max(N, 128), 128)
    w_t = jnp.zeros((K, n_pad), compute_dtype).at[:, :N].set(
        weight.T.astype(compute_dtype))
    b2d = jnp.zeros((1, n_pad), jnp.float32).at[0, :N].set(
        bias.astype(jnp.float32))
    return w_t, b2d


# --------------------------------------------------------------------------
# Tile selection
# --------------------------------------------------------------------------
def _pick_tiles(M, K, Np, tm_req, tn_req, k_chunk_req,
                x_itemsize, w_itemsize, out_itemsize, budget):
    """Choose (tm, tn, tk) so the pipelined working set fits `budget` bytes.

    Policy: grow tm first (mem-bound lever #1, auto mode only); split K with an
    f32 accumulator instead of shrinking tm/tn when K is large; if still over
    budget shrink tm before letting tn drop below 256 (v6e/v7x MXU width).
    """
    def clamp_tm(t):
        t = max(8, _round_up(t, 8))
        return M if t >= M else t

    def clamp_tn(t):
        t = max(128, _round_up(t, 128))
        return Np if t >= Np else t

    auto_tm = tm_req is None
    tm = clamp_tm(256 if auto_tm else tm_req)
    tn = clamp_tn(512 if tn_req is None else tn_req)

    def usage(tm_b, tn_b, tk_b, split_k):
        x_bufs = 1 if (not split_k and tm_b >= M) else 2    # resident -> 1 buf
        w_bufs = 1 if (not split_k and tn_b >= Np) else 2
        u = x_bufs * tm_b * tk_b * x_itemsize               # activation tiles
        u += w_bufs * tk_b * tn_b * w_itemsize               # weight tiles
        u += 2 * tn_b * 4                                    # bias (f32)
        u += 2 * tm_b * tn_b * out_itemsize                  # 2x-buffered output
        if split_k:
            u += tm_b * tn_b * 4                             # f32 accumulator
        return u + 2 * 1024 * 1024                           # internal scratch

    def pick_tk(tm_b, tn_b):
        if K <= 128:
            return K
        if k_chunk_req is not None:
            if k_chunk_req >= K:
                return K
            return max(128, min(_round_up(k_chunk_req, 128), _round_down(K, 128)))
        if usage(tm_b, tn_b, K, False) <= budget:
            return K                          # full contraction resident
        # K split: largest 128-multiple chunk whose working set fits.
        fixed = usage(tm_b, tn_b, 0, True)
        per_k = 2 * tm_b * x_itemsize + 2 * tn_b * w_itemsize
        t = _round_down(max(budget - fixed, 0) // per_k, 128)
        t = min(t, _round_down(K, 128))
        if t < 128:
            return 128
        # Prefer a nearby exact divisor of K (avoids tail masking).
        for cand in range(t, max(128, t // 2) - 1, -128):
            if K % cand == 0:
                return cand
        return t

    if auto_tm:
        kg = min(K, 2048)          # assume <=2048-wide K chunks while sizing tm
        while tm < M and tm < 2048:
            tm2 = clamp_tm(2 * tm)
            if tm2 == tm or usage(tm2, tn, kg, kg < K) > budget:
                break
            tm = tm2

    tk = pick_tk(tm, tn)

    def over():
        return usage(tm, tn, tk, tk < K) > budget

    while over() and tm > 256:
        tm = max(256, _round_up(tm // 2, 8)); tk = pick_tk(tm, tn)
    while over() and tn > 256:
        tn = max(256, _round_down(max(tn // 2, 256), 128)); tk = pick_tk(tm, tn)
    while over() and tm > 8:
        tm = max(8, _round_up(tm // 2, 8)); tk = pick_tk(tm, tn)
    if over() and tn > 128:
        tn = 128; tk = pick_tk(tm, tn)

    return tm, tn, tk, usage(tm, tn, tk, tk < K)


# --------------------------------------------------------------------------
# Forward
# --------------------------------------------------------------------------
@functools.partial(jax.jit, static_argnames=("n_out", "tm", "tn", "k_chunk"))
def feature_mapping_text(x, w_t, b2d, *, n_out=None, tm=None, tn=None,
                         k_chunk=None):
    """Equivalent of FeatureMapping_text.forward: y = x @ weight.T + bias.

    x:     [..., K]  (any float dtype; cast to w_t.dtype on-chip for the MXU)
    w_t:   [K, Np]   pre-transposed, lane-padded weight (prepare_linear_params)
    b2d:   [1, Np]   float32 bias
    n_out: true output_dim (<= Np); padded columns are sliced off.
    tm/tn/k_chunk: optional static tile overrides (None = auto).
    """
    *lead, K = x.shape
    Kw, Np = w_t.shape
    assert Kw == K, f"weight K ({Kw}) != activation K ({K})"
    if n_out is None:
        n_out = Np
    M = math.prod(lead) if lead else 1
    x2d = x.reshape(M, K)

    x_item = x.dtype.itemsize
    w_item = w_t.dtype.itemsize
    out_item = x.dtype.itemsize

    # Generation-aware VMEM budgets: 128 MiB/TC on v5e/v6e, 64 MiB/TC on v7x.
    cap = _vmem_capacity_bytes()
    if cap >= 100 * 1024 * 1024:
        tile_budget = 88 * 1024 * 1024
        vmem_limit = 98 * 1024 * 1024
    else:
        tile_budget = min(40 * 1024 * 1024, (cap * 5) // 8)
        vmem_limit = min(46 * 1024 * 1024, (cap * 23) // 32)

    tm_blk, tn_blk, tk_blk, usage_est = _pick_tiles(
        M, K, Np, tm, tn, k_chunk, x_item, w_item, out_item, tile_budget)

    grid_m = pl.cdiv(M, tm_blk)
    grid_n = pl.cdiv(Np, tn_blk)
    grid_k = pl.cdiv(K, tk_blk)

    # Traffic-aware grid order: the outer non-reduction axis decides which
    # operand gets re-streamed from HBM -- re-stream the cheaper one.
    x_bytes = M * K * x_item
    w_bytes = K * Np * w_item
    t_m_outer = x_bytes * (1 if grid_k == 1 else grid_n) + w_bytes * grid_m
    t_n_outer = x_bytes * grid_n + w_bytes * (1 if grid_k == 1 else grid_m)
    m_outer = t_m_outer <= t_n_outer

    if m_outer:
        grid = (grid_m, grid_n, grid_k)
        x_map = lambda i, j, k: (i, k)
        w_map = lambda i, j, k: (k, j)
        b_map = lambda i, j, k: (0, j)
        o_map = lambda i, j, k: (i, j)
    else:
        grid = (grid_n, grid_m, grid_k)
        x_map = lambda j, i, k: (i, k)
        w_map = lambda j, i, k: (k, j)
        b_map = lambda j, i, k: (0, j)
        o_map = lambda j, i, k: (i, j)

    # Single-buffer grid-invariant tiles; triple-buffer the streamed weight
    # K-chunk when the budget allows (hides DMA latency behind the short
    # per-chunk matmuls).
    x_kw, w_kw, b_kw = {}, {}, {}
    if grid_m == 1 and grid_k == 1:
        x_kw["pipeline_mode"] = pl.Buffered(1)
    if grid_n == 1 and grid_k == 1:
        w_kw["pipeline_mode"] = pl.Buffered(1)
    elif grid_k > 1 and usage_est + tk_blk * tn_blk * w_item <= tile_budget:
        w_kw["pipeline_mode"] = pl.Buffered(3)
    if grid_n == 1:
        b_kw["pipeline_mode"] = pl.Buffered(1)

    if grid_k > 1:
        kernel = functools.partial(
            _linear_kernel_ksplit, k_valid=K, tk=tk_blk, n_k=grid_k)
        scratch_shapes = [pltpu.VMEM((tm_blk, tn_blk), jnp.float32)]
    else:
        kernel = _linear_kernel_single
        scratch_shapes = []

    flops = 2 * M * K * Np
    bytes_accessed = int(min(t_m_outer, t_n_outer) + Np * 4 + M * Np * out_item)

    out = pl.pallas_call(
        kernel,
        out_shape=jax.ShapeDtypeStruct((M, Np), x.dtype),
        grid_spec=pltpu.PrefetchScalarGridSpec(
            num_scalar_prefetch=0,
            grid=grid,
            in_specs=[
                pl.BlockSpec((tm_blk, tk_blk), x_map, **x_kw),   # activations
                pl.BlockSpec((tk_blk, tn_blk), w_map, **w_kw),   # weight
                pl.BlockSpec((1, tn_blk), b_map, **b_kw),        # bias
            ],
            out_specs=pl.BlockSpec((tm_blk, tn_blk), o_map),
            scratch_shapes=scratch_shapes,
        ),
        compiler_params=pltpu.CompilerParams(
            # Both non-reduction axes "parallel" (v7x megacore can shard the
            # large one across its 2 TCs); K is "arbitrary" (accumulator carry).
            dimension_semantics=("parallel", "parallel", "arbitrary"),
            vmem_limit_bytes=vmem_limit,
        ),
        cost_estimate=pl.CostEstimate(
            flops=flops, transcendentals=0, bytes_accessed=bytes_accessed),
    )(x2d, w_t, b2d)

    if n_out != Np:
        # TODO(synk): fuse this slice into the consumer (or let it read the
        # 128-padded slab) to avoid the extra HBM pass when N % 128 != 0.
        out = out[:, :n_out]
    return out.reshape(*lead, n_out)


# --------------------------------------------------------------------------
# Init + demo
# --------------------------------------------------------------------------
def init_linear_params(key, input_dim, output_dim, dtype=jnp.float32):
    """Deterministic init mimicking nn.Linear defaults (uniform +/- 1/sqrt(fan_in))."""
    kw, kb = jax.random.split(key)
    bound = 1.0 / (input_dim ** 0.5)
    weight = jax.random.uniform(
        kw, (output_dim, input_dim), minval=-bound, maxval=bound, dtype=dtype)
    bias = jax.random.uniform(
        kb, (output_dim,), minval=-bound, maxval=bound, dtype=dtype)
    return weight, bias


if __name__ == "__main__":
    root = jax.random.PRNGKey(0)
    keys = jax.random.split(root, 3)

    def run_case(key, batch, seq, input_dim, output_dim, compute_dtype, tol,
                 **overrides):
        k_x, k_p = jax.random.split(key)
        x = jax.random.normal(k_x, (batch, seq, input_dim), dtype=jnp.float32)
        weight, bias = init_linear_params(k_p, input_dim, output_dim)
        w_t, b2d = prepare_linear_params(weight, bias, compute_dtype=compute_dtype)
        y = feature_mapping_text(x, w_t, b2d, n_out=output_dim, **overrides)
        y = jax.block_until_ready(y)
        y_ref = x @ weight.T + bias
        assert y.shape == (batch, seq, output_dim), y.shape
        err = float(jnp.max(jnp.abs(y - y_ref)))
        assert jnp.allclose(y, y_ref, atol=tol, rtol=tol), err
        return y

    # 1) f32 compute, everything resident (single-step path, Buffered(1) tiles).
    run_case(keys[0], batch=2, seq=8, input_dim=32, output_dim=64,
             compute_dtype=jnp.float32, tol=1e-4)

    # 2) bf16 compute (default), forced K split with a partial tail chunk:
    #    exercises the f32 accumulator, pl.when init/finalize and tail masking.
    run_case(keys[1], batch=2, seq=16, input_dim=384, output_dim=192,
             compute_dtype=jnp.bfloat16, tol=3e-2, k_chunk=256)

    # 3) bf16 compute, multi-tile M and N grid: exercises the traffic-aware
    #    (n-outer) grid ordering and multi-block output tiling.
    run_case(keys[2], batch=4, seq=16, input_dim=64, output_dim=384,
             compute_dtype=jnp.bfloat16, tol=3e-2, tm=16, tn=128)

    print("KERNEL_OK")
</pallas_src>

<mosaic_0001>
module attributes {stable_mosaic.version = 11 : i64} {
  func.func @_linear_kernel_single(%arg0: i32, %arg1: i32, %arg2: i32, %arg3: memref<16x32xf32, #tpu.memory_space<vmem>>, %arg4: memref<32x128xf32, #tpu.memory_space<vmem>>, %arg5: memref<1x128xf32, #tpu.memory_space<vmem>>, %arg6: memref<16x128xf32, #tpu.memory_space<vmem>>) attributes {dimension_semantics = [#tpu.dimension_semantics<parallel>, #tpu.dimension_semantics<parallel>, #tpu.dimension_semantics<arbitrary>], iteration_bounds = array<i64: 1, 1, 1>, scalar_prefetch = 0 : i64, scratch_operands = 0 : i64, tpu.core_type = #tpu.core_type<tc>, window_params = [{pipeline_mode = #tpu.pipeline_mode<synchronous>, transform_indices = @transform_0, window_bounds = array<i64: 16, 32>}, {pipeline_mode = #tpu.pipeline_mode<synchronous>, transform_indices = @transform_1, window_bounds = array<i64: 32, 128>}, {pipeline_mode = #tpu.pipeline_mode<synchronous>, transform_indices = @transform_2, window_bounds = array<i64: 1, 128>}, {transform_indices = @transform_3, window_bounds = array<i64: 16, 128>}]} {
    %c0 = arith.constant 0 : index
    %c0_0 = arith.constant 0 : index
    %0 = vector.load %arg3[%c0, %c0_0] : memref<16x32xf32, #tpu.memory_space<vmem>>, vector<16x32xf32>
    %c0_1 = arith.constant 0 : index
    %c0_2 = arith.constant 0 : index
    %1 = vector.load %arg4[%c0_1, %c0_2] : memref<32x128xf32, #tpu.memory_space<vmem>>, vector<32x128xf32>
    %cst = arith.constant dense<0.000000e+00> : vector<16x128xf32>
    %2 = tpu.matmul %0, %1, %cst {dimension_numbers = #tpu.dot_dimension_numbers<[1], [0], [0], [1], [0, 0, 1, 1], [], []>} : vector<16x32xf32>, vector<32x128xf32>, vector<16x128xf32> -> vector<16x128xf32>
    %c0_3 = arith.constant 0 : index
    %c0_4 = arith.constant 0 : index
    %3 = vector.load %arg5[%c0_3, %c0_4] : memref<1x128xf32, #tpu.memory_space<vmem>>, vector<1x128xf32>
    %4 = vector.broadcast %3 : vector<1x128xf32> to vector<16x128xf32>
    %5 = arith.addf %2, %4 : vector<16x128xf32>
    %c0_5 = arith.constant 0 : index
    %c0_6 = arith.constant 0 : index
    %6 = vector.load %arg6[%c0_5, %c0_6] : memref<16x128xf32, #tpu.memory_space<vmem>>, vector<16x128xf32>
    tpu.vector_store %arg6[%c0_5, %c0_6], %5 {strides = array<i32>} : memref<16x128xf32, #tpu.memory_space<vmem>>, vector<16x128xf32>,
    return
  }
  func.func @transform_0(%arg0: i32, %arg1: i32, %arg2: i32) -> (i32, i32) {
    %c0_i32 = arith.constant 0 : i32
    return %arg0, %arg2 : i32, i32
  }
  func.func @transform_1(%arg0: i32, %arg1: i32, %arg2: i32) -> (i32, i32) {
    %c0_i32 = arith.constant 0 : i32
    return %arg2, %arg1 : i32, i32
  }
  func.func @transform_2(%arg0: i32, %arg1: i32, %arg2: i32) -> (i32, i32) {
    %c0_i32 = arith.constant 0 : i32
    %c0_i32_0 = arith.constant 0 : i32
    return %c0_i32, %arg1 : i32, i32
  }
  func.func @transform_3(%arg0: i32, %arg1: i32, %arg2: i32) -> (i32, i32) {
    %c0_i32 = arith.constant 0 : i32
    return %arg0, %arg1 : i32, i32
  }
}

</mosaic_0001>

<llo_original>
// kernel: feature_mapping_text.1
$region0: #{feature_mapping_text.1}
  #allocation0 [shape = 'u32[]', space=smem, size = 0x4, offset = 0x4, fixed_abs, tag = 'smem constant byte address 0x4 - core index']
  #allocation1 [shape = 'u32[144,128]{1,0:T(1,128)}', space=vmem, size = 0x12000, scoped, tag = 'internal scratch']
  %s0 = inlined_call_operand.hbm [shape: f32[16,32], index: 0, kind: input, shape index: {}]
  %s1 = inlined_call_operand.hbm [shape: f32[32,128], index: 1, kind: input, shape index: {}]
  %s2 = inlined_call_operand.vmem [shape: f32[1,128], index: 2, kind: input, shape index: {}]
  %s3 = inlined_call_operand.vmem [shape: f32[16,128], index: 3, kind: output, shape index: {}]
  %s4 = sld [smem:[#allocation0]]
  $region30: #{feature_mapping_text.1} parent=0
    _
  %s6 = ssub.s32 1, %s4
  %s7 = scalar_select 0, %s6, %s4
  $region1: #{feature_mapping_text.1} parent=0
    #allocation2 [shape = 'u8[8192]{0}', space=vmem, size = 0x2000, scoped, tag = 'input window, operand 0, single buffered']
    #allocation3 [shape = 's32[1]{0}', space=sflag, size = 0x4, scoped, tag = 'scoped memory for feature_mapping_text.1']
    #allocation4 [shape = 'u8[16384]{0}', space=vmem, size = 0x4000, scoped, tag = 'input window, operand 1, single buffered']
    #allocation5 [shape = 's32[1]{0}', space=sflag, size = 0x4, scoped, tag = 'scoped memory for feature_mapping_text.1']
    %8 = vsyncpa [#allocation3], 0
    %9 = vsyncpa [#allocation5], 0
    // Predicated region
    $region2: #{feature_mapping_text.1} parent=1 // pred_check
      _
    $region3: #{feature_mapping_text.1} parent=1 // pred_check_branch
      %11 = sbr.rel (0) target = $region5
    $region4: #{feature_mapping_text.1} parent=1 // pred_region
      %s13 = ssub.s32 256, 256
      %14 = vsyncadd [#allocation3], %s13
      %s15 = sshll.u32 [#allocation2], 4
      %s16 = int_to_ptr.vmem [resolvable:$true] %s15
      %21 = dma.hbm_to_vmem [thread:$0]  %s0, 256, %s16, [#allocation3], 128, 128, 8
    $region5: #{feature_mapping_text.1} parent=1 // pred_fallthru
      _
    // Predicated region
    $region6: #{feature_mapping_text.1} parent=1 // pred_check
      _
    $region7: #{feature_mapping_text.1} parent=1 // pred_check_branch
      %23 = sbr.rel (0) target = $region9
    $region8: #{feature_mapping_text.1} parent=1 // pred_region
      %s25 = ssub.s32 512, 512
      %26 = vsyncadd [#allocation5], %s25
      %s27 = sshll.u32 [#allocation4], 4
      %s28 = int_to_ptr.vmem [resolvable:$true] %s27
      %33 = dma.hbm_to_vmem [thread:$0]  %s1, 512, %s28, [#allocation5], 128, 128, 8
    $region9: #{feature_mapping_text.1} parent=1 // pred_fallthru
      _
    // Predicated region
    $region10: #{feature_mapping_text.1} parent=1 // pred_check
      _
    $region11: #{feature_mapping_text.1} parent=1 // pred_check_branch
      %35 = sbr.rel (0) target = $region13
    $region12: #{feature_mapping_text.1} parent=1 // pred_region
      _
    $region13: #{feature_mapping_text.1} parent=1 // pred_fallthru
      _
    // Predicated region
    $region14: #{feature_mapping_text.1} parent=1 // pred_check
      _
    $region15: #{feature_mapping_text.1} parent=1 // pred_check_branch
      %37 = sbr.rel (0) target = $region17
    $region16: #{feature_mapping_text.1} parent=1 // pred_region
      %38 = dma.done [#allocation3], 256
    $region17: #{feature_mapping_text.1} parent=1 // pred_fallthru
      _
    // Predicated region
    $region18: #{feature_mapping_text.1} parent=1 // pred_check
      _
    $region19: #{feature_mapping_text.1} parent=1 // pred_check_branch
      %40 = sbr.rel (0) target = $region21
    $region20: #{feature_mapping_text.1} parent=1 // pred_region
      %41 = dma.done [#allocation5], 512
    $region21: #{feature_mapping_text.1} parent=1 // pred_fallthru
      _
    %v42 = vld [vmem:[#allocation2] sm:$0xff]
    %v43 = vld [vmem:[#allocation2 + $0x8] sm:$0xff]
    %v44 = vld [vmem:[#allocation4] sm:$0xff]
    %v45 = vld [vmem:[#allocation4 + $0x8] sm:$0xff]
    %v46 = vld [vmem:[#allocation4 + $0x10] sm:$0xff]
    %v47 = vld [vmem:[#allocation4 + $0x18] sm:$0xff]
    %v48 = vld [vmem:[%s2] sm:$0x1]
    %v50 = vlaneseq
    %v51 = vshrl.u32 %v50, 7
    %v52 = vsub.s32 0, %v51
    %v53 = vrot.slane %v48, %v52
    %vm55 = vcmask 261120
    %v57 = vsel %vm55, %v42, 0
    %v60 = vsel %vm55, %v43, 0
    %62 = vmatprep.subr.mxu0 0.0
    %63 = vmatpush1.msra.mxu0 %v44
    %64 = vmatprep.subr.mxu0 0.0
    %65 = vmatpush1.msra.mxu0 %v45
    %66 = vmatprep.subr.mxu0 0.0
    %67 = vmatpush1.msra.mxu0 %v46
    %68 = vmatprep.subr.mxu0 0.0
    %69 = vmatpush1.msra.mxu0 %v47
    %70 = vmatprep.subr.mxu0 0.0
    %71 = vmatpush1.msra.mxu0 0.0
    %72 = vmatprep.subr.mxu0 0.0
    %73 = vmatpush1.msra.mxu0 0.0
    %74 = vmatprep.subr.mxu0 0.0
    %75 = vmatpush1.msra.mxu0 0.0
    %76 = vmatprep.subr.mxu0 0.0
    %77 = vmatpush1.msra.mxu0 0.0
    %78 = vmatprep.subr.mxu0 0.0
    %79 = vmatpush1.msra.mxu0 0.0
    %80 = vmatprep.subr.mxu0 0.0
    %81 = vmatpush1.msra.mxu0 0.0
    %82 = vmatprep.subr.mxu0 0.0
    %83 = vmatpush1.msra.mxu0 0.0
    %84 = vmatprep.subr.mxu0 0.0
    %85 = vmatpush1.msra.mxu0 0.0
    %86 = vmatprep.subr.mxu0 0.0
    %87 = vmatpush1.msra.mxu0 0.0
    %88 = vmatprep.subr.mxu0 0.0
    %89 = vmatpush1.msra.mxu0 0.0
    %90 = vmatprep.subr.mxu0 0.0
    %91 = vmatpush1.msra.mxu0 0.0
    %92 = vmatprep.subr.mxu0 0.0
    %93 = vmatpush1.msra.mxu0 0.0
    %94 = vmatprep.subr.mxu0 0.0
    %95 = vmatpush1.msra.mxu0 0.0
    %96 = vmatprep.subr.mxu0 0.0
    %97 = vmatpush1.msra.mxu0 0.0
    %98 = vmatprep.subr.mxu0 0.0
    %99 = vmatpush1.msra.mxu0 0.0
    %100 = vmatprep.subr.mxu0 0.0
    %101 = vmatpush1.msra.mxu0 0.0
    %102 = vmatprep.subr.mxu0 0.0
    %103 = vmatpush1.msra.mxu0 0.0
    %104 = vmatprep.subr.mxu0 0.0
    %105 = vmatpush1.msra.mxu0 0.0
    %106 = vmatprep.subr.mxu0 0.0
    %107 = vmatpush1.msra.mxu0 0.0
    %108 = vmatprep.subr.mxu0 0.0
    %109 = vmatpush1.msra.mxu0 0.0
    %110 = vmatprep.subr.mxu0 0.0
    %111 = vmatpush1.msra.mxu0 0.0
    %112 = vmatprep.subr.mxu0 0.0
    %113 = vmatpush1.msra.mxu0 0.0
    %114 = vmatprep.subr.mxu0 0.0
    %115 = vmatpush1.msra.mxu0 0.0
    %116 = vmatprep.subr.mxu0 0.0
    %117 = vmatpush1.msra.mxu0 0.0
    %118 = vmatprep.subr.mxu0 0.0
    %119 = vmatpush1.msra.mxu0 0.0
    %120 = vmatprep.subr.mxu0 0.0
    %121 = vmatpush1.msra.mxu0 0.0
    %122 = vmatprep.subr.mxu0 0.0
    %123 = vmatpush1.msra.mxu0 0.0
    %124 = vmatprep.subr.mxu0 0.0
    %125 = vmatpush1.msra.mxu0 0.0
    %126 = vmatprep.mubr.f32.mxu0 0.0
    %127 = vmatmul.mubr.f32.gmra.mrb[0].mxu0 %v57
    %v128 = vpop.f32.mrb[0].mxu0
    %v129 = vadd.f32 %v53, %v128
    %v130 = vpop.f32.mrb[0].mxu0
    %131 = vmatprep.mubr.f32.mxu0 0.0
    %132 = vmatmul.mubr.f32.gmra.mrb[0].mxu0 %v60
    %v133 = vpop.f32.mrb[0].mxu0
    %v134 = vadd.f32 %v53, %v133
    %v135 = vpop.f32.mrb[0].mxu0
    %136 = vdwg.mxu0
    %137 = vst [vmem:[%s3] sm:$0xff] %v129
    %138 = vst [vmem:[%s3 + $0x8] sm:$0xff] %v134
    // Predicated region
    $region22: #{feature_mapping_text.1} parent=1 // pred_check
      _
    $region23: #{feature_mapping_text.1} parent=1 // pred_check_branch
      %140 = sbr.rel (0) target = $region25
    $region24: #{feature_mapping_text.1} parent=1 // pred_region
      _
    $region25: #{feature_mapping_text.1} parent=1 // pred_fallthru
      _
    // Predicated region
    $region26: #{feature_mapping_text.1} parent=1 // pred_check
      _
    $region27: #{feature_mapping_text.1} parent=1 // pred_check_branch
      %142 = sbr.rel (0) target = $region29
    $region28: #{feature_mapping_text.1} parent=1 // pred_region
      _
    $region29: #{feature_mapping_text.1} parent=1 // pred_fallthru
      _
    %143 = vsyncpa [#allocation3], 1
    %144 = vsyncpa [#allocation5], 1

</llo_original>
